<compile_context>
chip_gen: v5e
topology: v5e:2x2
jax: 0.10.0
libtpu: 0.0.40
codegen_flags: <defaults>
</compile_context>

<pallas_src>
import functools

import jax
import jax.numpy as jnp
from jax import lax
from jax.experimental import pallas as pl
from jax.experimental.pallas import tpu as pltpu

# MXU operand dtype for the transformer matmuls (accumulation is always f32).
# bf16 feeds the bf16-native MXUs on v5e/v6e/v7x and halves weight DMA bytes.
# Set to jnp.float32 if closer parity with the f32 PyTorch reference is needed.
MATMUL_DTYPE = jnp.bfloat16

_MIB = 1 << 20


def _vmem_limit(est_bytes):
    # Raise the scoped-VMEM ceiling above the 16/32 MiB defaults but never above
    # v7x's 64 MiB physical budget.
    return int(min(max(int(est_bytes), 32 * _MIB), 64 * _MIB))


def _pick_token_tile(L, target=512):
    """Largest token tile <= target that keeps conv blocks (8,128)-legal."""
    if L <= target:
        return L
    for t in range(target - target % 128, 0, -128):
        if L % t == 0:
            return t
    return L  # untileable extent: fall back to full L


def _pick_batch_tile(B):
    """Largest divisor of B that still leaves >=2 parallel grid steps
    (keeps both v7x TensorCores busy); else process all of B at once."""
    for bt in range(B // 2, 0, -1):
        if B % bt == 0:
            return bt
    return B


# ----------------------------------------------------------------------------
# 1x1x1 Conv3d (no bias) == per-token matmul over channels, transpose fused.
# ----------------------------------------------------------------------------
def _in_proj_kernel(x_ref, w_ref, o_ref):
    # x_ref: (1, Ci, TL) channels-on-sublanes slab straight from NCDHW layout.
    # o_ref: (1, TL, dim) token-major. The layout flip is folded into the MXU
    # contraction (trans_a matmul): out[t, d] = sum_c x[c, t] * w[c, d].
    w = w_ref[...]
    acc = lax.dot_general(
        x_ref[0].astype(w.dtype), w,
        dimension_numbers=(((0,), (0,)), ((), ())),
        preferred_element_type=jnp.float32)
    o_ref[0] = acc.astype(o_ref.dtype)


def in_proj_conv1x1(x_bcl, w, out_dim, token_tile):
    """x_bcl: (B, Ci, L) NCDHW-flattened, w: (Ci, dim)  ->  (B, L, dim)."""
    B, Ci, L = x_bcl.shape
    TL = token_tile
    nt = L // TL
    est = 4 * (Ci * TL + TL * out_dim) * 4 + Ci * out_dim * 4 + 4 * _MIB
    return pl.pallas_call(
        _in_proj_kernel,
        out_shape=jax.ShapeDtypeStruct((B, L, out_dim), x_bcl.dtype),
        grid=(B, nt),
        in_specs=[
            pl.BlockSpec((1, Ci, TL), lambda b, t: (b, 0, t)),
            pl.BlockSpec((Ci, out_dim), lambda b, t: (0, 0)),  # resident weight
        ],
        out_specs=pl.BlockSpec((1, TL, out_dim), lambda b, t: (b, t, 0)),
        compiler_params=pltpu.CompilerParams(
            dimension_semantics=("parallel", "parallel"),
            vmem_limit_bytes=_vmem_limit(est)),
    )(x_bcl, w)


def _out_proj_kernel(x_ref, w_ref, o_ref):
    # x_ref: (1, TL, dim) token-major, w_ref: (dim, Ci), o_ref: (1, Ci, TL).
    # out[c, t] = sum_d w[d, c] * x[t, d]  -> lane-dense (tokens on lanes) store.
    w = w_ref[...]
    acc = lax.dot_general(
        w, x_ref[0].astype(w.dtype),
        dimension_numbers=(((0,), (1,)), ((), ())),
        preferred_element_type=jnp.float32)
    o_ref[0] = acc.astype(o_ref.dtype)


def out_proj_conv1x1(x_tokens, w, token_tile):
    """x_tokens: (B, L, dim), w: (dim, Ci)  ->  (B, Ci, L) NCDHW-flattened."""
    B, L, dim = x_tokens.shape
    Ci = w.shape[1]
    TL = token_tile
    nt = L // TL
    est = 4 * (TL * dim + Ci * TL) * 4 + dim * Ci * 4 + 4 * _MIB
    return pl.pallas_call(
        _out_proj_kernel,
        out_shape=jax.ShapeDtypeStruct((B, Ci, L), x_tokens.dtype),
        grid=(B, nt),
        in_specs=[
            pl.BlockSpec((1, TL, dim), lambda b, t: (b, t, 0)),
            pl.BlockSpec((dim, Ci), lambda b, t: (0, 0)),      # resident weight
        ],
        out_specs=pl.BlockSpec((1, Ci, TL), lambda b, t: (b, 0, t)),
        compiler_params=pltpu.CompilerParams(
            dimension_semantics=("parallel", "parallel"),
            vmem_limit_bytes=_vmem_limit(est)),
    )(x_tokens, w)


# ----------------------------------------------------------------------------
# Depth-fused pre-LN transformer (all layers in one kernel, x resident in VMEM)
# ----------------------------------------------------------------------------
def _layer_norm(x, g, b, eps=1e-5):
    mu = jnp.mean(x, axis=-1, keepdims=True)
    var = jnp.mean(jnp.square(x - mu), axis=-1, keepdims=True)
    return (x - mu) * lax.rsqrt(var + eps) * g + b


def _gelu_exact(x):
    return 0.5 * x * (1.0 + lax.erf(x * 0.7071067811865476))


def _fusion_kernel(*refs, n_scales, seq_per_scale, heads, dim_head, depth):
    x_refs = refs[:n_scales]
    (ln1g_ref, ln1b_ref, wqkv_ref, wout_ref, bout_ref,
     ln2g_ref, ln2b_ref, wff1_ref, bff1_ref, wff2_ref, bff2_ref) = \
        refs[n_scales:n_scales + 11]
    y_refs = refs[n_scales + 11:n_scales + 11 + n_scales]
    x_acc = refs[-1]

    d = pl.program_id(1)
    L = seq_per_scale
    BT, N, C = x_acc.shape
    scale = float(dim_head) ** -0.5

    # First depth step for this batch block: assemble the concatenated token
    # sequence directly in VMEM (replaces the HBM torch.cat).
    @pl.when(d == 0)
    def _():
        for i in range(n_scales):
            x_acc[:, i * L:(i + 1) * L, :] = x_refs[i][...].astype(jnp.float32)

    w_qkv = wqkv_ref[0]
    w_out = wout_ref[0]
    w_ff1 = wff1_ref[0]
    w_ff2 = wff2_ref[0]
    cdt = w_qkv.dtype                       # MXU operand dtype (bf16 by default)

    x = x_acc[...]                          # (BT, N, C) f32, resident over depth
    x2 = x.reshape(BT * N, C)

    # ---- attention branch (pre-LN) ----
    xn = _layer_norm(x2, ln1g_ref[0], ln1b_ref[0])
    qkv = jnp.dot(xn.astype(cdt), w_qkv, preferred_element_type=jnp.float32)
    q = (qkv[:, 0 * C:1 * C] * scale).reshape(BT, N, C).astype(cdt)  # scale folded in
    k = qkv[:, 1 * C:2 * C].reshape(BT, N, C).astype(cdt)
    v = qkv[:, 2 * C:3 * C].reshape(BT, N, C).astype(cdt)
    lane = lax.broadcasted_iota(jnp.int32, (1, 1, C), 2)

    # TODO(synk): for very long sequences use flash-style KV tiling (online
    # softmax) so only (tq, tk) logit tiles are live instead of full (N, N).
    def head_body(h, ctx):
        # Lane-mask out all channels except head h's dim_head slice: equivalent
        # to per-head slicing but keeps lane-friendly (N, C) tiles (no dh=8-minor
        # reshapes, no per-head concat), and the fori_loop bounds live ranges.
        msk = ((lane >= h * dim_head) & (lane < (h + 1) * dim_head)).astype(cdt)
        logits = jnp.einsum('bqc,bkc->bqk', q * msk, k,
                            preferred_element_type=jnp.float32)     # (BT, N, N)
        m = jnp.max(logits, axis=-1, keepdims=True)
        p = jnp.exp(logits - m)
        p = p * pl.reciprocal(jnp.sum(p, axis=-1, keepdims=True), approx=True)
        # v masked the same way -> each head fills only its own output channels.
        return ctx + jnp.einsum('bqk,bkc->bqc', p.astype(cdt), v * msk,
                                preferred_element_type=jnp.float32)

    ctx = lax.fori_loop(0, heads, head_body,
                        jnp.zeros((BT, N, C), jnp.float32), unroll=True)
    attn = jnp.dot(ctx.reshape(BT * N, C).astype(cdt), w_out,
                   preferred_element_type=jnp.float32) + bout_ref[0]
    x2 = x2 + attn

    # ---- MLP branch (pre-LN) ----
    xn2 = _layer_norm(x2, ln2g_ref[0], ln2b_ref[0])
    h1 = jnp.dot(xn2.astype(cdt), w_ff1,
                 preferred_element_type=jnp.float32) + bff1_ref[0]
    h1 = _gelu_exact(h1)
    h2 = jnp.dot(h1.astype(cdt), w_ff2,
                 preferred_element_type=jnp.float32) + bff2_ref[0]
    x2 = x2 + h2

    x_acc[...] = x2.reshape(BT, N, C)

    # Last depth step: split back per scale straight from VMEM (no HBM chunk).
    @pl.when(d == depth - 1)
    def _():
        for i in range(n_scales):
            y_refs[i][...] = x_acc[:, i * L:(i + 1) * L, :].astype(y_refs[i].dtype)


def transformer_fusion(proj_list, fparams, *, heads, depth):
    """proj_list[i]: (B, L, C). Runs all `depth` layers in one pallas_call."""
    S = len(proj_list)
    B, L, C = proj_list[0].shape
    N = S * L
    dh = C // heads
    BT = _pick_batch_tile(B)
    mlp = fparams["w_ff1"].shape[-1]

    cdt = MATMUL_DTYPE
    wq = fparams["w_qkv"].astype(cdt)
    wo = fparams["w_out"].astype(cdt)
    w1 = fparams["w_ff1"].astype(cdt)
    w2 = fparams["w_ff2"].astype(cdt)

    kernel = functools.partial(
        _fusion_kernel, n_scales=S, seq_per_scale=L,
        heads=heads, dim_head=dh, depth=depth)

    def pspec(arr):
        nd = arr.ndim
        return pl.BlockSpec((1,) + arr.shape[1:],
                            lambda b, d: (d,) + (0,) * (nd - 1))

    x_specs = [pl.BlockSpec((BT, L, C), lambda b, d: (b, 0, 0)) for _ in range(S)]
    out_specs = tuple(pl.BlockSpec((BT, L, C), lambda b, d: (b, 0, 0))
                      for _ in range(S))
    out_shape = tuple(jax.ShapeDtypeStruct((B, L, C), proj_list[0].dtype)
                      for _ in range(S))

    isz = jnp.dtype(cdt).itemsize
    act = BT * N * C * 4
    est = (4 * S * BT * L * C * 4
           + 2 * ((C * 3 * C + C * C + 2 * C * mlp) * isz + (5 * C + mlp) * 4)
           + 8 * act
           + 3 * BT * N * N * 4
           + 2 * BT * N * mlp * 4
           + 8 * _MIB)

    outs = pl.pallas_call(
        kernel,
        out_shape=out_shape,
        grid=(B // BT, depth),
        in_specs=x_specs + [
            pspec(fparams["ln1_g"]), pspec(fparams["ln1_b"]),
            pspec(wq), pspec(wo), pspec(fparams["b_out"]),
            pspec(fparams["ln2_g"]), pspec(fparams["ln2_b"]),
            pspec(w1), pspec(fparams["b_ff1"]),
            pspec(w2), pspec(fparams["b_ff2"]),
        ],
        out_specs=out_specs,
        scratch_shapes=[pltpu.VMEM((BT, N, C), jnp.float32)],
        compiler_params=pltpu.CompilerParams(
            dimension_semantics=("parallel", "arbitrary"),
            vmem_limit_bytes=_vmem_limit(est)),
    )(*proj_list,
      fparams["ln1_g"], fparams["ln1_b"], wq, wo, fparams["b_out"],
      fparams["ln2_g"], fparams["ln2_b"], w1, fparams["b_ff1"],
      w2, fparams["b_ff2"])
    return list(outs)


# ----------------------------------------------------------------------------
# SemanticMapFusion forward
# ----------------------------------------------------------------------------
def init_params(key, in_dim_list, dim, heads, depth):
    keys = iter(jax.random.split(key, 2 * len(in_dim_list) + 8))
    std = 0.02

    def rnd(shape):
        return (std * jax.random.normal(next(keys), shape)).astype(jnp.float32)

    mlp = dim  # TransformerBlock(dim, depth, heads, dim//heads, mlp_dim=dim)
    fusion = {
        "ln1_g": jnp.ones((depth, 1, dim), jnp.float32),
        "ln1_b": jnp.zeros((depth, 1, dim), jnp.float32),
        "w_qkv": rnd((depth, dim, 3 * dim)),
        "w_out": rnd((depth, dim, dim)),
        "b_out": jnp.zeros((depth, 1, dim), jnp.float32),
        "ln2_g": jnp.ones((depth, 1, dim), jnp.float32),
        "ln2_b": jnp.zeros((depth, 1, dim), jnp.float32),
        "w_ff1": rnd((depth, dim, mlp)),
        "b_ff1": jnp.zeros((depth, 1, mlp), jnp.float32),
        "w_ff2": rnd((depth, mlp, dim)),
        "b_ff2": jnp.zeros((depth, 1, dim), jnp.float32),
    }
    return {
        "in_proj": [rnd((c, dim)) for c in in_dim_list],    # 1x1x1 conv, no bias
        "out_proj": [rnd((dim, c)) for c in in_dim_list],   # 1x1x1 conv, no bias
        "fusion": fusion,
    }


def semantic_map_fusion(map_list, params, *, dim, heads, depth):
    """map_list[i]: (B, Ci, D, H, W) NCDHW (PyTorch convention)."""
    B, _, D, H, W = map_list[0].shape
    L = D * H * W
    for m in map_list:
        assert m.shape[0] == B and m.shape[2:] == (D, H, W)
    TL = _pick_token_tile(L)

    # in_proj: read NCDHW slabs directly (no wrapper transpose), emit (B, L, dim).
    proj = []
    for i, m in enumerate(map_list):
        x_bcl = m.reshape(B, m.shape[1], L)                  # free reshape
        proj.append(in_proj_conv1x1(x_bcl, params["in_proj"][i], dim, TL))

    # all transformer layers fused; VMEM-resident concat/split across scales.
    attned = transformer_fusion(proj, params["fusion"], heads=heads, depth=depth)

    # out_proj: lane-dense (B, Ci, L) outputs, free reshape back to NCDHW.
    outs = []
    for i, y in enumerate(attned):
        o = out_proj_conv1x1(y, params["out_proj"][i], TL)   # (B, Ci, L)
        outs.append(o.reshape(B, -1, D, H, W))
    return outs


if __name__ == "__main__":
    key = jax.random.PRNGKey(0)
    B, D, H, W = 2, 4, 4, 4
    in_dim_list = [4, 8]
    dim, heads, depth = 32, 4, 2

    k_maps, k_params = jax.random.split(key)
    map_keys = jax.random.split(k_maps, len(in_dim_list))
    map_list = [
        jax.random.normal(map_keys[i], (B, c, D, H, W), jnp.float32)
        for i, c in enumerate(in_dim_list)
    ]
    params = init_params(k_params, in_dim_list, dim, heads, depth)

    outs = semantic_map_fusion(map_list, params, dim=dim, heads=heads, depth=depth)
    for i, o in enumerate(outs):
        jax.block_until_ready(o)
        assert o.shape == (B, in_dim_list[i], D, H, W), o.shape
        assert bool(jnp.all(jnp.isfinite(o)))
    print("KERNEL_OK")
</pallas_src>

<mosaic_0001>
module attributes {stable_mosaic.version = 11 : i64} {
  func.func @_in_proj_kernel(%arg0: i32, %arg1: i32, %arg2: memref<1x4x64xf32, #tpu.memory_space<vmem>>, %arg3: memref<4x32xf32, #tpu.memory_space<vmem>>, %arg4: memref<1x64x32xf32, #tpu.memory_space<vmem>>) attributes {dimension_semantics = [#tpu.dimension_semantics<parallel>, #tpu.dimension_semantics<parallel>], iteration_bounds = array<i64: 2, 1>, scalar_prefetch = 0 : i64, scratch_operands = 0 : i64, tpu.core_type = #tpu.core_type<tc>, window_params = [{transform_indices = @transform_0, window_bounds = array<i64: 1, 4, 64>}, {pipeline_mode = #tpu.pipeline_mode<synchronous>, transform_indices = @transform_1, window_bounds = array<i64: 4, 32>}, {transform_indices = @transform_2, window_bounds = array<i64: 1, 64, 32>}]} {
    %c0 = arith.constant 0 : index
    %c0_0 = arith.constant 0 : index
    %0 = vector.load %arg3[%c0, %c0_0] : memref<4x32xf32, #tpu.memory_space<vmem>>, vector<4x32xf32>
    %c0_1 = arith.constant 0 : index
    %c0_2 = arith.constant 0 : index
    %c0_3 = arith.constant 0 : index
    %1 = vector.load %arg2[%c0_1, %c0_2, %c0_3] : memref<1x4x64xf32, #tpu.memory_space<vmem>>, vector<1x4x64xf32>
    %2 = vector.shape_cast %1 : vector<1x4x64xf32> to vector<4x64xf32>
    %cst = arith.constant dense<0.000000e+00> : vector<64x32xf32>
    %3 = tpu.matmul %2, %0, %cst {dimension_numbers = #tpu.dot_dimension_numbers<[0], [0], [1], [1], [0, 1, 1, 1], [], []>} : vector<4x64xf32>, vector<4x32xf32>, vector<64x32xf32> -> vector<64x32xf32>
    %c0_4 = arith.constant 0 : index
    %c0_5 = arith.constant 0 : index
    %c0_6 = arith.constant 0 : index
    %4 = vector.load %arg4[%c0_4, %c0_5, %c0_6] : memref<1x64x32xf32, #tpu.memory_space<vmem>>, vector<1x64x32xf32>
    %5 = vector.shape_cast %4 : vector<1x64x32xf32> to vector<64x32xf32>
    %6 = vector.shape_cast %3 : vector<64x32xf32> to vector<1x64x32xf32>
    tpu.vector_store %arg4[%c0_4, %c0_5, %c0_6], %6 {strides = array<i32>} : memref<1x64x32xf32, #tpu.memory_space<vmem>>, vector<1x64x32xf32>,
    return
  }
  func.func @transform_0(%arg0: i32, %arg1: i32) -> (i32, i32, i32) {
    %c0_i32 = arith.constant 0 : i32
    %c0_i32_0 = arith.constant 0 : i32
    return %arg0, %c0_i32, %arg1 : i32, i32, i32
  }
  func.func @transform_1(%arg0: i32, %arg1: i32) -> (i32, i32) {
    %c0_i32 = arith.constant 0 : i32
    %c0_i32_0 = arith.constant 0 : i32
    %c0_i32_1 = arith.constant 0 : i32
    return %c0_i32, %c0_i32_0 : i32, i32
  }
  func.func @transform_2(%arg0: i32, %arg1: i32) -> (i32, i32, i32) {
    %c0_i32 = arith.constant 0 : i32
    %c0_i32_0 = arith.constant 0 : i32
    return %arg0, %arg1, %c0_i32 : i32, i32, i32
  }
}

</mosaic_0001>

<llo_original>
// kernel: tpu_custom_call.1
$region0: #{tpu_custom_call.1}
  #allocation0 [shape = 'u32[]', space=smem, size = 0x4, offset = 0x4, fixed_abs, tag = 'smem constant byte address 0x4 - core index']
  #allocation1 [shape = 'u32[72,128]{1,0:T(1,128)}', space=vmem, size = 0x9000, scoped, tag = 'internal scratch']
  %s0 = inlined_call_operand.hbm [shape: f32[2,4,64], index: 0, kind: input, shape index: {}]
  %s1 = inlined_call_operand.hbm [shape: f32[4,32], index: 1, kind: input, shape index: {}]
  %s2 = inlined_call_operand.vmem [shape: f32[2,64,32], index: 2, kind: output, shape index: {}]
  %s3 = sld [smem:[#allocation0]]
  $region49: #{tpu_custom_call.1} parent=0
    _
  %s5 = ssub.s32 1, %s3
  %s6 = scalar_select 0, %s5, %s3
  $region1: #{tpu_custom_call.1} parent=0
    #allocation2 [shape = 'u8[4096]{0}', space=vmem, size = 0x1000, scoped, tag = 'input window, operand 0']
    #allocation3 [shape = 's32[2]{0}', space=sflag, size = 0x8, scoped, tag = 'scoped memory for tpu_custom_call.1']
    #allocation4 [shape = 'u8[2048]{0}', space=vmem, size = 0x800, scoped, tag = 'input window, operand 1, single buffered']
    #allocation5 [shape = 's32[1]{0}', space=sflag, size = 0x4, scoped, tag = 'scoped memory for tpu_custom_call.1']
    %7 = vsyncpa [#allocation3], 0
    %s8 = scalar_lea.sflag [#allocation3], 1
    %9 = vsyncpa %s8, 0
    %10 = vsyncpa [#allocation5], 0
    loop: start=0, step=1, limit=4
    $region2: #{tpu_custom_call.1} parent=1 // loop_pre_header
      _
    $region3: #{tpu_custom_call.1} parent=1 // loop_header
      %s12 = sphi 0, %s16
      %p13 = scmp.ge.s32.totalorder %s12, 4
      %s19 = sphi 0, %s31
      %s20 = sphi 0, %s27
      %s21 = sphi 0, %s19
      %s22 = sphi 0, %s20
      %s23 = sphi 0, %s21
      %s24 = sphi 0, %s22
      %s36 = sphi 0, %s38
      %s39 = sphi 0, %s36
      %s40 = sphi 0, %s39
      %s56 = sphi 0, %s40
      %s60 = sphi 0, %s60
      %s62 = sphi 0, %s60
      %s63 = sphi 0, %s62
      %s77 = sphi 0, %s63
      %s85 = sphi 0, %s87
      %s88 = sphi 0, %s85
      %s89 = sphi 0, %s88
      %s105 = sphi 0, %s89
    $region4: #{tpu_custom_call.1} parent=1 // loop_header_branch
      %15 = sbr.rel (%p13) target = $region8
    $region5: #{tpu_custom_call.1} parent=1 // loop_body
      %s17 = ssub.s32 %s12, 1
      %s18 = ssub.s32 %s12, 2
      %s25 = sadd.s32 1, %s20
      %p26 = scmp.ge.s32.totalorder %s25, 1
      %s27 = scalar_select %p26, 0, %s25
      %s28 = sadd.s32 1, %s19
      %s29 = scalar_select %p26, %s28, %s19
      %p30 = scmp.ge.s32.totalorder %s29, 2
      %s31 = scalar_select %p30, 0, %s29
      %s32 = ssub.s32 %s19, %s31
      %s33 = ssub.s32 %s20, %s27
      %s34 = sor.u32 %s32, %s33
      %p35 = scmp.eq.s32.totalorder %s34, 0
      %s37 = sadd.s32 %s36, 1
      %s38 = scalar_select %p35, %s36, %s37
      %p41 = pneg %p35
      %p42 = scmp.eq.s32.totalorder %s12, 1
      %p43 = por %p41, %p42
      %p44 = scmp.ne.s32.totalorder %s36, %s39
      %p45 = scmp.eq.s32.totalorder %s12, 0
      %p46 = por %p44, %p45
      %p47 = scmp.ne.s32.totalorder %s36, %s39
      %p48 = scmp.eq.s32.totalorder %s17, 1
      %p49 = por %p47, %p48
      %p50 = scmp.ne.s32.totalorder %s39, %s40
      %p51 = scmp.eq.s32.totalorder %s17, 0
      %p52 = por %p50, %p51
      %p53 = scmp.ne.s32.totalorder %s39, %s40
      %p54 = scmp.eq.s32.totalorder %s18, 1
      %p55 = por %p53, %p54
      %p57 = scmp.ne.s32.totalorder %s40, %s56
      %p58 = scmp.eq.s32.totalorder %s18, 0
      %p59 = por %p57, %p58
      %s61 = sadd.s32 %s60, 1
      %p64 = scmp.eq.s32.totalorder %s12, 1
      %p65 = scmp.ne.s32.totalorder %s60, %s62
      %p66 = scmp.eq.s32.totalorder %s12, 0
      %p67 = por %p65, %p66
      %p68 = scmp.ne.s32.totalorder %s60, %s62
      %p69 = scmp.eq.s32.totalorder %s17, 1
      %p70 = por %p68, %p69
      %p71 = scmp.ne.s32.totalorder %s62, %s63
      %p72 = scmp.eq.s32.totalorder %s17, 0
      %p73 = por %p71, %p72
      %p74 = scmp.ne.s32.totalorder %s62, %s63
      %p75 = scmp.eq.s32.totalorder %s18, 1
      %p76 = por %p74, %p75
      %p78 = scmp.ne.s32.totalorder %s63, %s77
      %p79 = scmp.eq.s32.totalorder %s18, 0
      %p80 = por %p78, %p79
      %s81 = ssub.s32 %s19, %s31
      %s82 = ssub.s32 %s20, %s27
      %s83 = sor.u32 %s81, %s82
      %p84 = scmp.eq.s32.totalorder %s83, 0
      %s86 = sadd.s32 %s85, 1
      %s87 = scalar_select %p84, %s85, %s86
      %p90 = pneg %p84
      %p91 = scmp.eq.s32.totalorder %s12, 1
      %p92 = por %p90, %p91
      %p93 = scmp.ne.s32.totalorder %s85, %s88
      %p94 = scmp.eq.s32.totalorder %s12, 0
      %p95 = por %p93, %p94
      %p96 = scmp.ne.s32.totalorder %s85, %s88
      %p97 = scmp.eq.s32.totalorder %s17, 1
      %p98 = por %p96, %p97
      %p99 = scmp.ne.s32.totalorder %s88, %s89
      %p100 = scmp.eq.s32.totalorder %s17, 0
      %p101 = por %p99, %p100
      %p102 = scmp.ne.s32.totalorder %s88, %s89
      %p103 = scmp.eq.s32.totalorder %s18, 1
      %p104 = por %p102, %p103
      %p106 = scmp.ne.s32.totalorder %s89, %s105
      %p107 = scmp.eq.s32.totalorder %s18, 0
      %p108 = por %p106, %p107
      %p109 = scmp.le.s32.totalorder 1, %s12
      %p110 = scmp.lt.s32.totalorder %s12, 3
      %p111 = pnand %p109, %p110
      %p112 = pneg %p111
      // Predicated region
      $region9: #{tpu_custom_call.1} parent=5 // pred_check
        _
      $region10: #{tpu_custom_call.1} parent=5 // pred_check_branch
        %114 = sbr.rel (%p111) target = $region12
      $region11: #{tpu_custom_call.1} parent=5 // pred_region
        %s115 = ssub.s32 %s12, 1
        // Predicated region
        $region13: #{tpu_custom_call.1} parent=11 // pred_check
          %p116 = pneg %p73
        $region14: #{tpu_custom_call.1} parent=11 // pred_check_branch
          %118 = sbr.rel (%p116) target = $region16
        $region15: #{tpu_custom_call.1} parent=11 // pred_region
          %120 = vsyncadd [#allocation5], 0
          %s122 = sshll.u32 %s1, 4
          %s123 = int_to_ptr.hbm [resolvable:$true] %s122
          %s124 = sshll.u32 [#allocation4], 4
          %s125 = int_to_ptr.vmem [resolvable:$true] %s124
          %127 = dma.hbm_to_vmem [thread:$0]  %s123, 64, %s125, [#allocation5]
        $region16: #{tpu_custom_call.1} parent=11 // pred_fallthru
          _
      $region12: #{tpu_custom_call.1} parent=5 // pred_fallthru
        _
      %p128 = scmp.lt.s32.totalorder %s12, 2
      // Predicated region
      $region17: #{tpu_custom_call.1} parent=5 // pred_check
        %p129 = pneg %p128
      $region18: #{tpu_custom_call.1} parent=5 // pred_check_branch
        %131 = sbr.rel (%p129) target = $region20
      $region19: #{tpu_custom_call.1} parent=5 // pred_region
        // Predicated region
        $region21: #{tpu_custom_call.1} parent=19 // pred_check
          %p132 = pneg %p46
        $region22: #{tpu_custom_call.1} parent=19 // pred_check_branch
          %134 = sbr.rel (%p132) target = $region24
        $region23: #{tpu_custom_call.1} parent=19 // pred_region
          %s135 = sand.u32 %s36, 1
          %s136 = scalar_lea.sflag [#allocation3], %s135
          %s137 = sand.u32 %s36, 1
          %s138 = smul.addr %s137, 4
          %s139 = scalar_lea.vmem [#allocation2], %s138
          %141 = vsyncadd %s136, 0
          %s142 = sadd.s32 %s20, %s19
          %s143 = smul.addr %s142, 4
          %s144 = scalar_lea.hbm %s0, %s143
          %s146 = sshll.u32 %s144, 4
          %s147 = int_to_ptr.hbm [resolvable:$true] %s146
          %s148 = sshll.u32 %s139, 4
          %s149 = int_to_ptr.vmem [resolvable:$true] %s148
          %151 = dma.hbm_to_vmem [thread:$0]  %s147, 64, %s149, %s136
        $region24: #{tpu_custom_call.1} parent=19 // pred_fallthru
          _
      $region20: #{tpu_custom_call.1} parent=5 // pred_fallthru
        _
      %p152 = scmp.le.s32.totalorder 1, %s12
      %p153 = scmp.lt.s32.totalorder %s12, 3
      %p154 = pnand %p152, %p153
      %p155 = pneg %p154
      // Predicated region
      $region25: #{tpu_custom_call.1} parent=5 // pred_check
        _
      $region26: #{tpu_custom_call.1} parent=5 // pred_check_branch
        %157 = sbr.rel (%p154) target = $region28
      $region27: #{tpu_custom_call.1} parent=5 // pred_region
        %s158 = ssub.s32 %s12, 1
        %s159 = sand.u32 %s39, 1
        %s160 = scalar_lea.sflag [#allocation3], %s159
        %s161 = sand.u32 %s39, 1
        %s162 = smul.addr %s161, 4
        %s163 = scalar_lea.vmem [#allocation2], %s162
        // Predicated region
        $region29: #{tpu_custom_call.1} parent=27 // pred_check
          %p164 = pneg %p52
        $region30: #{tpu_custom_call.1} parent=27 // pred_check_branch
          %166 = sbr.rel (%p164) target = $region32
        $region31: #{tpu_custom_call.1} parent=27 // pred_region
          %168 = dma.done %s160, 64
        $region32: #{tpu_custom_call.1} parent=27 // pred_fallthru
          _
        // Predicated region
        $region33: #{tpu_custom_call.1} parent=27 // pred_check
          %p169 = pneg %p73
        $region34: #{tpu_custom_call.1} parent=27 // pred_check_branch
          %171 = sbr.rel (%p169) target = $region36
        $region35: #{tpu_custom_call.1} parent=27 // pred_region
          %173 = dma.done [#allocation5], 64
        $region36: #{tpu_custom_call.1} parent=27 // pred_fallthru
          _
        %s174 = sand.u32 %s39, 1
        %s175 = scalar_lea.sflag [#allocation3], %s174
        %s176 = sand.u32 %s39, 1
        %s177 = smul.addr %s176, 4
        %s178 = scalar_lea.vmem [#allocation2], %s177
        %p179 = pneg %p52
        %p180 = pneg %p49
        %p181 = pneg %p73
        %p182 = pneg %p70
        %p183 = pneg %p101
        %p184 = pneg %p98
        %s185 = smul.u32 8, %s22
        %p186 = scmp.lt.s32.totalorder %s21, 1
        %s187 = scalar_select %p186, %s21, 1
        %p188 = scmp.lt.s32.totalorder %s185, 7
        %s189 = scalar_select %p188, %s185, 7
        %s190 = smul.addr %s187, 8
        %s191 = sadd.s32 %s189, %s190
        %s192 = smul.addr %s191, 8
        %s193 = scalar_lea.vmem %s2, %s192
        %s194 = smul.u32 8, %s22
        %p195 = scmp.lt.s32.totalorder %s21, 1
        %s196 = scalar_select %p195, %s21, 1
        %p197 = scmp.lt.s32.totalorder %s194, 7
        %s198 = scalar_select %p197, %s194, 7
        %s199 = smul.addr %s196, 8
        %s200 = sadd.s32 %s198, %s199
        %s201 = smul.addr %s200, 8
        %s202 = scalar_lea.vmem %s2, %s201
        %s203 = smul.u32 8, %s22
        %v204 = vld [vmem:[#allocation4] sm:$0xf]
        %v205 = vld [vmem:[%s163] sm:$0xf]
        %206 = vxpose.xlu0.b32.start [1/16] %v205, 128
        %207 = vxpose.xlu0.b32.cont [2/16] 0.0, 128
        %208 = vxpose.xlu0.b32.cont [3/16] 0.0, 128
        %209 = vxpose.xlu0.b32.cont [4/16] 0.0, 128
        %210 = vxpose.xlu0.b32.cont [5/16] 0.0, 128
        %211 = vxpose.xlu0.b32.cont [6/16] 0.0, 128
        %212 = vxpose.xlu0.b32.cont [7/16] 0.0, 128
        %213 = vxpose.xlu0.b32.cont [8/16] 0.0, 128
        %214 = vxpose.xlu0.b32.cont [9/16] 0.0, 128
        %215 = vxpose.xlu0.b32.cont [10/16] 0.0, 128
        %216 = vxpose.xlu0.b32.cont [11/16] 0.0, 128
        %217 = vxpose.xlu0.b32.cont [12/16] 0.0, 128
        %218 = vxpose.xlu0.b32.cont [13/16] 0.0, 128
        %219 = vxpose.xlu0.b32.cont [14/16] 0.0, 128
        %220 = vxpose.xlu0.b32.cont [15/16] 0.0, 128
        %221 = vxpose.xlu0.b32.end [16/16] 0.0, 128
        %v222 = vpop.trf.xlu0
        %v223 = vpop.trf.xlu0
        %v224 = vpop.trf.xlu0
        %v225 = vpop.trf.xlu0
        %v226 = vpop.trf.xlu0
        %v227 = vpop.trf.xlu0
        %v228 = vpop.trf.xlu0
        %v229 = vpop.trf.xlu0
        %v230 = vpop.trf.xlu0
        %v231 = vpop.trf.xlu0
        %v232 = vpop.trf.xlu0
        %v233 = vpop.trf.xlu0
        %v234 = vpop.trf.xlu0
        %v235 = vpop.trf.xlu0
        %v236 = vpop.trf.xlu0
        %v237 = vpop.trf.xlu0
        %vm238 = vcmask 31744
        %v240 = vsel %vm238, %v222, 0
        %v243 = vsel %vm238, %v223, 0
        %v246 = vsel %vm238, %v224, 0
        %v249 = vsel %vm238, %v225, 0
        %v252 = vsel %vm238, %v226, 0
        %v255 = vsel %vm238, %v227, 0
        %v258 = vsel %vm238, %v228, 0
        %v261 = vsel %vm238, %v229, 0
        %vm263 = vcmask 1043456
        %v265 = vsel %vm263, %v204, 0
        %267 = vmatpush.msra.mxu0 0.0
        %268 = vmatpush.msra.mxu0 0.0
        %269 = vmatpush.msra.mxu0 0.0
        %270 = vmatpush.msra.mxu0 0.0
        %271 = vmatpush.msra.mxu0 0.0
        %272 = vmatpush.msra.mxu0 0.0
        %273 = vmatpush.msra.mxu0 0.0
        %274 = vmatpush.msra.mxu0 0.0
        %275 = vmatpush.msra.mxu0 0.0
        %276 = vmatpush.msra.mxu0 0.0
        %277 = vmatpush.msra.mxu0 0.0
        %278 = vmatpush.msra.mxu0 0.0
        %279 = vmatpush.msra.mxu0 0.0
        %280 = vmatpush.msra.mxu0 0.0
        %281 = vmatpush.msra.mxu0 0.0
        %282 = vmatpush.msra.mxu0 %v265
        %283 = vmatmul.f32.gmra.mxu0 %v240
        %v284 = vpop.f32.mrf.mxu0
        %v285 = vadd.f32 0.0, %v284
        %286 = vmatmul.f32.gmra.mxu0 %v243
        %v287 = vpop.f32.mrf.mxu0
        %v288 = vadd.f32 0.0, %v287
        %289 = vmatmul.f32.gmra.mxu0 %v246
        %v290 = vpop.f32.mrf.mxu0
        %v291 = vadd.f32 0.0, %v290
        %292 = vmatmul.f32.gmra.mxu0 %v249
        %v293 = vpop.f32.mrf.mxu0
        %v294 = vadd.f32 0.0, %v293
        %295 = vmatmul.f32.gmra.mxu0 %v252
        %v296 = vpop.f32.mrf.mxu0
        %v297 = vadd.f32 0.0, %v296
        %298 = vmatmul.f32.gmra.mxu0 %v255
        %v299 = vpop.f32.mrf.mxu0
        %v300 = vadd.f32 0.0, %v299
        %301 = vmatmul.f32.gmra.mxu0 %v258
        %v302 = vpop.f32.mrf.mxu0
        %v303 = vadd.f32 0.0, %v302
        %304 = vmatmul.f32.gmra.mxu0 %v261
        %v305 = vpop.f32.mrf.mxu0
        %v306 = vadd.f32 0.0, %v305
        %307 = vdwg.mxu0
        %vm308 = vcmask 261120
        %309 = vst.msk [vmem:[%s202] sm:$0xff] %vm308, %v285
        %310 = vst.msk [vmem:[%s202 + $0x8] sm:$0xff] %vm308, %v288
        %311 = vst.msk [vmem:[%s202 + $0x10] sm:$0xff] %vm308, %v291
        %312 = vst.msk [vmem:[%s202 + $0x18] sm:$0xff] %vm308, %v294
        %313 = vst.msk [vmem:[%s202 + $0x20] sm:$0xff] %vm308, %v297
        %314 = vst.msk [vmem:[%s202 + $0x28] sm:$0xff] %vm308, %v300
        %315 = vst.msk [vmem:[%s202 + $0x30] sm:$0xff] %vm308, %v303
        %316 = vst.msk [vmem:[%s202 + $0x38] sm:$0xff] %vm308, %v306
        %s317 = smul.u32 8, %s22
        %p318 = scmp.lt.s32.totalorder %s21, 1
        %s319 = scalar_select %p318, %s21, 1
        %p320 = scmp.lt.s32.totalorder %s317, 7
        %s321 = scalar_select %p320, %s317, 7
        %s322 = smul.addr %s319, 8
        %s323 = sadd.s32 %s321, %s322
        %s324 = smul.addr %s323, 8
        %s325 = scalar_lea.vmem %s2, %s324
        // Predicated region
        $region37: #{tpu_custom_call.1} parent=27 // pred_check
          %p326 = pneg %p98
        $region38: #{tpu_custom_call.1} parent=27 // pred_check_branch
          %328 = sbr.rel (%p326) target = $region40
        $region39: #{tpu_custom_call.1} parent=27 // pred_region
          %s329 = smul.u32 8, %s22
        $region40: #{tpu_custom_call.1} parent=27 // pred_fallthru
          _
      $region28: #{tpu_custom_call.1} parent=5 // pred_fallthru
        _
      %p330 = scmp.le.s32.totalorder 2, %s12
      // Predicated region
      $region41: #{tpu_custom_call.1} parent=5 // pred_check
        %p331 = pneg %p330
      $region42: #{tpu_custom_call.1} parent=5 // pred_check_branch
        %333 = sbr.rel (%p331) target = $region44
      $region43: #{tpu_custom_call.1} parent=5 // pred_region
        %s334 = ssub.s32 %s12, 2
        // Predicated region
        $region45: #{tpu_custom_call.1} parent=43 // pred_check
          %p335 = pneg %p104
        $region46: #{tpu_custom_call.1} parent=43 // pred_check_branch
          %337 = sbr.rel (%p335) target = $region48
        $region47: #{tpu_custom_call.1} parent=43 // pred_region
          %s338 = smul.u32 8, %s24
          %p339 = scmp.lt.s32.totalorder %s23, 1
          %s340 = scalar_select %p339, %s23, 1
          %p341 = scmp.lt.s32.totalorder %s338, 7
          %s342 = scalar_select %p341, %s338, 7
          %s343 = smul.addr %s340, 8
          %s344 = sadd.s32 %s342, %s343
          %s345 = smul.addr %s344, 8
          %s346 = scalar_lea.vmem %s2, %s345
        $region48: #{tpu_custom_call.1} parent=43 // pred_fallthru
          _
      $region44: #{tpu_custom_call.1} parent=5 // pred_fallthru
        _
    $region6: #{tpu_custom_call.1} parent=1 // loop_footer
      %s16 = sadd.s32 1, %s12
    $region7: #{tpu_custom_call.1} parent=1 // loop_footer_branch
      %11 = sbr.rel target = $region3
    $region8: #{tpu_custom_call.1} parent=1 // loop_exit
      _
    %347 = vsyncpa [#allocation3], 1
    %s348 = scalar_lea.sflag [#allocation3], 1
    %349 = vsyncpa %s348, 1
    %350 = vsyncpa [#allocation5], 1

</llo_original>
